<compile_context>
chip_gen: v6e
topology: v6e:2x2x1
jax: 0.10.0
libtpu: 0.0.40
codegen_flags: <defaults>
</compile_context>

<pallas_src>
import jax
import jax.numpy as jnp
from jax.experimental import pallas as pl
from jax.experimental.pallas import tpu as pltpu

_LANE = 128                      # vreg lane width
_SUBLANE = 8                     # f32 sublane count
_VMEM_TARGET_BYTES = 32 << 20    # stay inside the v6e/v7x scoped default


def _round_up(x, m):
    return (x + m - 1) // m * m


def _round_lanes(n):
    # Small dims: pad to the 128-lane vreg width.  Larger dims: pad to 256 so
    # bf16 tiles fill the 256-wide MXU on v6e/v7x (free when already aligned).
    return _round_up(n, 256 if n > _LANE else _LANE)


def _const_block_spec(shape):
    """VMEM-resident block (constant index_map across the batch grid).

    Single-buffered (pl.Buffered(1)) since the block never changes between grid
    steps — default pipelining would still allocate 2 buffers each, doubling
    resident-weight VMEM (matters most on v7x's 64 MiB).  Falls back to the
    default if this Pallas build doesn't take a per-BlockSpec pipeline_mode.
    """
    index_map = lambda i: (0,) * len(shape)
    try:
        return pl.BlockSpec(shape, index_map,
                            pipeline_mode=pl.Buffered(buffer_count=1))
    except TypeError:
        return pl.BlockSpec(shape, index_map)


# ----------------------------------------------------------------------------
# Kernel
# ----------------------------------------------------------------------------
def mlp_kernel(x_ref, w1_ref, b1_ref, w2_ref, b2_ref, o_ref):
    # Cast x to the matmul-operand dtype in-kernel (hides under the MXU and
    # avoids a wrapper-side pad/cast pass over x in HBM).
    x = x_ref[...].astype(w1_ref.dtype)
    # hidden = relu(x @ W1 + b1): MXU matmul, f32 accumulate, f32 epilogue.
    h = jnp.dot(x, w1_ref[...], preferred_element_type=jnp.float32)
    h = jnp.maximum(h + b1_ref[...], 0.0)
    # Narrow h right after the ReLU so the (tb, hp) temp lives at operand width
    # (halves VMEM pressure / second-matmul staging bandwidth when bf16).
    h = h.astype(w2_ref.dtype)
    # out = h @ W2 + b2
    out = jnp.dot(h, w2_ref[...], preferred_element_type=jnp.float32)
    o_ref[...] = (out + b2_ref[...]).astype(o_ref.dtype)


# ----------------------------------------------------------------------------
# One-time parameter preparation (pad + cast once, reuse every forward)
# ----------------------------------------------------------------------------
def prepare_params(w1_t, b1, w2_t, b2, *, matmul_dtype=jnp.bfloat16):
    """Pad/cast the Linear parameters once; reuse the result for every call.

    Weights are stored pre-transposed as [in_features, out_features] so the
    kernel does plain x @ W + b; biases are [1, out] in f32.

    matmul_dtype defaults to bf16 on ALL chips (v5e's MXU takes bf16 operands;
    accumulation and the bias/ReLU epilogue stay f32).  Pass jnp.float32 for a
    bit-tight reference path.

    Zero-padding keeps the math exact: x streams at its native width (no padded
    x columns exist), padded hidden columns are relu(0 + 0) = 0 and hit zero W2
    rows, padded output columns get 0 + 0 bias and are sliced away in
    net_forward.
    """
    n_feature, n_hidden = w1_t.shape
    n_output = w2_t.shape[1]
    hp = _round_lanes(n_hidden)
    op = _round_lanes(n_output)
    mdt = matmul_dtype
    f32 = jnp.float32

    w1_p = jnp.zeros((n_feature, hp), mdt).at[:, :n_hidden].set(w1_t.astype(mdt))
    b1_p = jnp.zeros((1, hp), f32).at[:, :n_hidden].set(
        b1.reshape(1, -1).astype(f32))
    w2_p = jnp.zeros((hp, op), mdt).at[:n_hidden, :n_output].set(w2_t.astype(mdt))
    b2_p = jnp.zeros((1, op), f32).at[:, :n_output].set(
        b2.reshape(1, -1).astype(f32))
    return {"w1": w1_p, "b1": b1_p, "w2": w2_p, "b2": b2_p,
            "n_output": n_output}


# ----------------------------------------------------------------------------
# Forward
# ----------------------------------------------------------------------------
def net_forward(x, params, *, block_batch=None):
    """relu(x @ W1 + b1) @ W2 + b2 — one Pallas kernel, batch-streamed grid."""
    batch, n_feature = x.shape
    w1_p, b1_p, w2_p, b2_p = params["w1"], params["b1"], params["w2"], params["b2"]
    n_output = params["n_output"]
    assert w1_p.shape[0] == n_feature, "x feature dim does not match W1"
    hp = w1_p.shape[1]
    op = w2_p.shape[1]
    out_dtype = x.dtype
    out_isize = jnp.dtype(out_dtype).itemsize

    # Resident (single-buffered) weight/bias VMEM bytes.
    weight_bytes = (w1_p.size * w1_p.dtype.itemsize + b1_p.size * 4 +
                    w2_p.size * w2_p.dtype.itemsize + b2_p.size * 4)
    # TODO(synk): if weight_bytes alone approaches v7x's 64 MiB VMEM (very large
    # n_feature/n_hidden), switch to a hidden/K-tiled reduction grid with an f32
    # accumulator scratch + pl.when init/finalize instead of all-resident weights.

    def _tile_bytes(tb):
        # double-buffered x/out tiles + f32 hidden temp + narrowed hidden copy
        return (2 * tb * n_feature * x.dtype.itemsize
                + 2 * tb * op * out_isize
                + tb * hp * 4
                + tb * hp * w2_p.dtype.itemsize)

    # ---- batch tile selection ----------------------------------------------
    if block_batch is None:
        if batch <= 256:
            # Tiny problem: single whole-array block, no pipeline machinery.
            tb = batch
        else:
            # Largest tile that keeps >= 4 pipeline steps (DMA/compute overlap)
            # and fits the VMEM target; stays a multiple of 8 and >= 128 so
            # each matmul is full MXU passes.
            tb = 128
            for cand in (2048, 1024, 512, 256):
                if (pl.cdiv(batch, cand) >= 4
                        and weight_bytes + _tile_bytes(cand) <= _VMEM_TARGET_BYTES):
                    tb = cand
                    break
    else:
        tb = min(block_batch, batch)
    if tb != batch:
        tb = max(_SUBLANE, (tb // _SUBLANE) * _SUBLANE)   # multiple of 8 when tiling
    grid = (pl.cdiv(batch, tb),)

    # ---- VMEM limit (v5e's scoped default is only 16 MiB) -------------------
    needed = weight_bytes + _tile_bytes(tb)
    vmem_limit = max(32 << 20, int(1.5 * needed) + (2 << 20))
    vmem_limit = min(vmem_limit, 112 << 20)

    # ---- advisory cost estimate ---------------------------------------------
    flops = 2 * batch * (n_feature * hp + hp * op)
    bytes_accessed = (x.size * x.dtype.itemsize + weight_bytes
                      + batch * op * out_isize)
    cost = pl.CostEstimate(flops=flops, transcendentals=0,
                           bytes_accessed=bytes_accessed)

    out_p = pl.pallas_call(
        mlp_kernel,
        out_shape=jax.ShapeDtypeStruct((batch, op), out_dtype),
        grid_spec=pltpu.PrefetchScalarGridSpec(
            num_scalar_prefetch=0,
            grid=grid,
            in_specs=[
                # x: streamed along the batch grid axis at native dtype/shape.
                pl.BlockSpec((tb, n_feature), lambda i: (i, 0)),
                # weights / biases: VMEM-resident, single-buffered.
                _const_block_spec((n_feature, hp)),
                _const_block_spec((1, hp)),
                _const_block_spec((hp, op)),
                _const_block_spec((1, op)),
            ],
            out_specs=pl.BlockSpec((tb, op), lambda i: (i, 0)),
        ),
        compiler_params=pltpu.CompilerParams(
            # Batch tiles are independent -> shard across v7x's 2 TensorCores.
            dimension_semantics=("parallel",),
            vmem_limit_bytes=vmem_limit,
        ),
        cost_estimate=cost,
    )(x, w1_p, b1_p, w2_p, b2_p)

    # Strip the lane padding on the output features.
    return out_p if op == n_output else out_p[:, :n_output]


# ----------------------------------------------------------------------------
# Init + demo
# ----------------------------------------------------------------------------
def init_linear_params(key, in_features, out_features, dtype=jnp.float32):
    """Deterministic init mimicking torch.nn.Linear (uniform +-1/sqrt(fan_in))."""
    k_w, k_b = jax.random.split(key)
    bound = 1.0 / jnp.sqrt(jnp.float32(in_features))
    # torch stores W as [out, in]; we keep the transposed [in, out] layout.
    w_t = jax.random.uniform(k_w, (in_features, out_features), dtype,
                             minval=-bound, maxval=bound)
    b = jax.random.uniform(k_b, (1, out_features), dtype,
                           minval=-bound, maxval=bound)
    return w_t, b


if __name__ == "__main__":
    # Net(n_feature=32, n_hidden=64, n_output=16)
    n_feature, n_hidden, n_output = 32, 64, 16

    key = jax.random.PRNGKey(0)
    k_x, k_x2, k_h, k_p = jax.random.split(key, 4)

    w1_t, b1 = init_linear_params(k_h, n_feature, n_hidden)
    w2_t, b2 = init_linear_params(k_p, n_hidden, n_output)

    def torch_ref(xv):  # same math as the PyTorch forward
        return jnp.maximum(xv @ w1_t + b1, 0.0) @ w2_t + b2

    # --- 1) f32 matmul path, tiny batch, single-block grid: tight check ------
    x_small = jax.random.normal(k_x, (8, n_feature), jnp.float32)
    params_f32 = prepare_params(w1_t, b1, w2_t, b2, matmul_dtype=jnp.float32)
    out_small = jax.block_until_ready(net_forward(x_small, params_f32))
    assert out_small.shape == (8, n_output)
    assert jnp.allclose(out_small, torch_ref(x_small), atol=1e-5, rtol=1e-5)

    # --- 2) default bf16 path, multi-step grid, batch % 8 != 0 ---------------
    x_big = jax.random.normal(k_x2, (200, n_feature), jnp.float32)
    params_bf16 = prepare_params(w1_t, b1, w2_t, b2)  # bf16 operands (default)
    out_big = jax.block_until_ready(
        net_forward(x_big, params_bf16, block_batch=64))   # 4 grid steps
    assert out_big.shape == (200, n_output)
    assert jnp.allclose(out_big, torch_ref(x_big), atol=3e-2, rtol=3e-2)

    print("KERNEL_OK")
</pallas_src>

<mosaic_0001>
module attributes {stable_mosaic.version = 11 : i64} {
  func.func @mlp_kernel(%arg0: i32, %arg1: memref<8x32xf32, #tpu.memory_space<vmem>>, %arg2: memref<32x128xf32, #tpu.memory_space<vmem>>, %arg3: memref<1x128xf32, #tpu.memory_space<vmem>>, %arg4: memref<128x128xf32, #tpu.memory_space<vmem>>, %arg5: memref<1x128xf32, #tpu.memory_space<vmem>>, %arg6: memref<8x128xf32, #tpu.memory_space<vmem>>) attributes {dimension_semantics = [#tpu.dimension_semantics<parallel>], iteration_bounds = array<i64: 1>, scalar_prefetch = 0 : i64, scratch_operands = 0 : i64, tpu.core_type = #tpu.core_type<tc>, window_params = [{transform_indices = @transform_0, window_bounds = array<i64: 8, 32>}, {pipeline_mode = #tpu.pipeline_mode<synchronous>, transform_indices = @transform_1, window_bounds = array<i64: 32, 128>}, {pipeline_mode = #tpu.pipeline_mode<synchronous>, transform_indices = @transform_2, window_bounds = array<i64: 1, 128>}, {pipeline_mode = #tpu.pipeline_mode<synchronous>, transform_indices = @transform_3, window_bounds = array<i64: 128, 128>}, {pipeline_mode = #tpu.pipeline_mode<synchronous>, transform_indices = @transform_4, window_bounds = array<i64: 1, 128>}, {transform_indices = @transform_5, window_bounds = array<i64: 8, 128>}]} {
    %c0 = arith.constant 0 : index
    %c0_0 = arith.constant 0 : index
    %0 = vector.load %arg1[%c0, %c0_0] : memref<8x32xf32, #tpu.memory_space<vmem>>, vector<8x32xf32>
    %c0_1 = arith.constant 0 : index
    %c0_2 = arith.constant 0 : index
    %1 = vector.load %arg2[%c0_1, %c0_2] : memref<32x128xf32, #tpu.memory_space<vmem>>, vector<32x128xf32>
    %cst = arith.constant dense<0.000000e+00> : vector<8x128xf32>
    %2 = tpu.matmul %0, %1, %cst {dimension_numbers = #tpu.dot_dimension_numbers<[1], [0], [0], [1], [0, 0, 1, 1], [], []>} : vector<8x32xf32>, vector<32x128xf32>, vector<8x128xf32> -> vector<8x128xf32>
    %c0_3 = arith.constant 0 : index
    %c0_4 = arith.constant 0 : index
    %3 = vector.load %arg3[%c0_3, %c0_4] : memref<1x128xf32, #tpu.memory_space<vmem>>, vector<1x128xf32>
    %4 = vector.broadcast %3 : vector<1x128xf32> to vector<8x128xf32>
    %5 = arith.addf %2, %4 : vector<8x128xf32>
    %cst_5 = arith.constant 0.000000e+00 : f32
    %6 = vector.broadcast %cst_5 : f32 to vector<8x128xf32>
    %7 = arith.maximumf %5, %6 : vector<8x128xf32>
    %c0_6 = arith.constant 0 : index
    %c0_7 = arith.constant 0 : index
    %8 = vector.load %arg4[%c0_6, %c0_7] : memref<128x128xf32, #tpu.memory_space<vmem>>, vector<128x128xf32>
    %cst_8 = arith.constant dense<0.000000e+00> : vector<8x128xf32>
    %9 = tpu.matmul %7, %8, %cst_8 {dimension_numbers = #tpu.dot_dimension_numbers<[1], [0], [0], [1], [0, 0, 1, 1], [], []>} : vector<8x128xf32>, vector<128x128xf32>, vector<8x128xf32> -> vector<8x128xf32>
    %c0_9 = arith.constant 0 : index
    %c0_10 = arith.constant 0 : index
    %10 = vector.load %arg5[%c0_9, %c0_10] : memref<1x128xf32, #tpu.memory_space<vmem>>, vector<1x128xf32>
    %11 = vector.broadcast %10 : vector<1x128xf32> to vector<8x128xf32>
    %12 = arith.addf %9, %11 : vector<8x128xf32>
    %c0_11 = arith.constant 0 : index
    %c0_12 = arith.constant 0 : index
    %13 = vector.load %arg6[%c0_11, %c0_12] : memref<8x128xf32, #tpu.memory_space<vmem>>, vector<8x128xf32>
    tpu.vector_store %arg6[%c0_11, %c0_12], %12 {strides = array<i32>} : memref<8x128xf32, #tpu.memory_space<vmem>>, vector<8x128xf32>,
    return
  }
  func.func @transform_0(%arg0: i32) -> (i32, i32) {
    %c0_i32 = arith.constant 0 : i32
    %c0_i32_0 = arith.constant 0 : i32
    return %arg0, %c0_i32 : i32, i32
  }
  func.func @transform_1(%arg0: i32) -> (i32, i32) {
    %c0_i32 = arith.constant 0 : i32
    %c0_i32_0 = arith.constant 0 : i32
    %c0_i32_1 = arith.constant 0 : i32
    return %c0_i32, %c0_i32_0 : i32, i32
  }
  func.func @transform_2(%arg0: i32) -> (i32, i32) {
    %c0_i32 = arith.constant 0 : i32
    %c0_i32_0 = arith.constant 0 : i32
    %c0_i32_1 = arith.constant 0 : i32
    return %c0_i32, %c0_i32_0 : i32, i32
  }
  func.func @transform_3(%arg0: i32) -> (i32, i32) {
    %c0_i32 = arith.constant 0 : i32
    %c0_i32_0 = arith.constant 0 : i32
    %c0_i32_1 = arith.constant 0 : i32
    return %c0_i32, %c0_i32_0 : i32, i32
  }
  func.func @transform_4(%arg0: i32) -> (i32, i32) {
    %c0_i32 = arith.constant 0 : i32
    %c0_i32_0 = arith.constant 0 : i32
    %c0_i32_1 = arith.constant 0 : i32
    return %c0_i32, %c0_i32_0 : i32, i32
  }
  func.func @transform_5(%arg0: i32) -> (i32, i32) {
    %c0_i32 = arith.constant 0 : i32
    %c0_i32_0 = arith.constant 0 : i32
    return %arg0, %c0_i32 : i32, i32
  }
}

</mosaic_0001>

<llo_original>
// kernel: tpu_custom_call.1
$region0: #{tpu_custom_call.1}
  #allocation0 [shape = 'u32[]', space=smem, size = 0x4, offset = 0x4, fixed_abs, tag = 'smem constant byte address 0x4 - core index']
  #allocation1 [shape = 'u32[144,128]{1,0:T(1,128)}', space=vmem, size = 0x12000, scoped, tag = 'internal scratch']
  %s0 = inlined_call_operand.hbm [shape: f32[8,32], index: 0, kind: input, shape index: {}]
  %s1 = inlined_call_operand.hbm [shape: f32[32,128], index: 1, kind: input, shape index: {}]
  %s2 = inlined_call_operand.vmem [shape: f32[1,128], index: 2, kind: input, shape index: {}]
  %s3 = inlined_call_operand.hbm [shape: f32[128,128], index: 3, kind: input, shape index: {}]
  %s4 = inlined_call_operand.vmem [shape: f32[1,128], index: 4, kind: input, shape index: {}]
  %s5 = inlined_call_operand.hbm [shape: f32[8,128], index: 5, kind: output, shape index: {}]
  %s6 = sld [smem:[#allocation0]]
  $region42: #{tpu_custom_call.1} parent=0
    _
  %s8 = ssub.s32 1, %s6
  %s9 = scalar_select 0, %s8, %s6
  $region1: #{tpu_custom_call.1} parent=0
    #allocation2 [shape = 'u8[4096]{0}', space=vmem, size = 0x1000, scoped, tag = 'input window, operand 0, single buffered']
    #allocation3 [shape = 's32[1]{0}', space=sflag, size = 0x4, scoped, tag = 'scoped memory for tpu_custom_call.1']
    #allocation4 [shape = 's32[1]{0}', space=sflag, size = 0x4, scoped, tag = 'scoped memory for tpu_custom_call.1']
    #allocation5 [shape = 'u8[16384]{0}', space=vmem, size = 0x4000, scoped, tag = 'input window, operand 1, single buffered']
    #allocation6 [shape = 's32[1]{0}', space=sflag, size = 0x4, scoped, tag = 'scoped memory for tpu_custom_call.1']
    #allocation7 [shape = 'u8[65536]{0}', space=vmem, size = 0x10000, scoped, tag = 'input window, operand 3, single buffered']
    #allocation8 [shape = 'u8[4096]{0}', space=vmem, size = 0x1000, scoped, tag = 'output window, operand 0, single buffered']
    %10 = vsyncpa [#allocation3], 0
    %11 = vsyncpa [#allocation6], 0
    %12 = vsyncpa [#allocation4], 0
    // Predicated region
    $region2: #{tpu_custom_call.1} parent=1 // pred_check
      _
    $region3: #{tpu_custom_call.1} parent=1 // pred_check_branch
      %14 = sbr.rel (0) target = $region5
    $region4: #{tpu_custom_call.1} parent=1 // pred_region
      %s16 = ssub.s32 128, 128
      %17 = vsyncadd [#allocation3], %s16
      %s19 = sshll.u32 [#allocation2], 4
      %s20 = int_to_ptr.vmem [resolvable:$true] %s19
      %22 = dma.hbm_to_vmem [thread:$0]  %s0, 128, %s20, [#allocation3]
    $region5: #{tpu_custom_call.1} parent=1 // pred_fallthru
      _
    // Predicated region
    $region6: #{tpu_custom_call.1} parent=1 // pred_check
      _
    $region7: #{tpu_custom_call.1} parent=1 // pred_check_branch
      %24 = sbr.rel (0) target = $region9
    $region8: #{tpu_custom_call.1} parent=1 // pred_region
      %s26 = ssub.s32 512, 512
      %27 = vsyncadd [#allocation6], %s26
      %s28 = sshll.u32 [#allocation5], 4
      %s29 = int_to_ptr.vmem [resolvable:$true] %s28
      %34 = dma.hbm_to_vmem [thread:$0]  %s1, 512, %s29, [#allocation6], 128, 128, 8
    $region9: #{tpu_custom_call.1} parent=1 // pred_fallthru
      _
    // Predicated region
    $region10: #{tpu_custom_call.1} parent=1 // pred_check
      _
    $region11: #{tpu_custom_call.1} parent=1 // pred_check_branch
      %36 = sbr.rel (0) target = $region13
    $region12: #{tpu_custom_call.1} parent=1 // pred_region
      _
    $region13: #{tpu_custom_call.1} parent=1 // pred_fallthru
      _
    // Predicated region
    $region14: #{tpu_custom_call.1} parent=1 // pred_check
      _
    $region15: #{tpu_custom_call.1} parent=1 // pred_check_branch
      %38 = sbr.rel (0) target = $region17
    $region16: #{tpu_custom_call.1} parent=1 // pred_region
      %s40 = ssub.s32 2048, 2048
      %41 = vsyncadd [#allocation6], %s40
      %s42 = sshll.u32 [#allocation7], 4
      %s43 = int_to_ptr.vmem [resolvable:$true] %s42
      %48 = dma.hbm_to_vmem [thread:$0]  %s3, 2048, %s43, [#allocation6], 128, 128, 8
    $region17: #{tpu_custom_call.1} parent=1 // pred_fallthru
      _
    // Predicated region
    $region18: #{tpu_custom_call.1} parent=1 // pred_check
      _
    $region19: #{tpu_custom_call.1} parent=1 // pred_check_branch
      %50 = sbr.rel (0) target = $region21
    $region20: #{tpu_custom_call.1} parent=1 // pred_region
      _
    $region21: #{tpu_custom_call.1} parent=1 // pred_fallthru
      _
    // Predicated region
    $region22: #{tpu_custom_call.1} parent=1 // pred_check
      _
    $region23: #{tpu_custom_call.1} parent=1 // pred_check_branch
      %52 = sbr.rel (0) target = $region25
    $region24: #{tpu_custom_call.1} parent=1 // pred_region
      %53 = dma.done [#allocation3], 128
    $region25: #{tpu_custom_call.1} parent=1 // pred_fallthru
      _
    // Predicated region
    $region26: #{tpu_custom_call.1} parent=1 // pred_check
      _
    $region27: #{tpu_custom_call.1} parent=1 // pred_check_branch
      %55 = sbr.rel (0) target = $region29
    $region28: #{tpu_custom_call.1} parent=1 // pred_region
      %56 = dma.done [#allocation6], 512
    $region29: #{tpu_custom_call.1} parent=1 // pred_fallthru
      _
    // Predicated region
    $region30: #{tpu_custom_call.1} parent=1 // pred_check
      _
    $region31: #{tpu_custom_call.1} parent=1 // pred_check_branch
      %58 = sbr.rel (0) target = $region33
    $region32: #{tpu_custom_call.1} parent=1 // pred_region
      %59 = dma.done [#allocation6], 2048
    $region33: #{tpu_custom_call.1} parent=1 // pred_fallthru
      _
    %v60 = vld [vmem:[#allocation2] sm:$0xff]
    %v61 = vld [vmem:[#allocation5] sm:$0xff]
    %v62 = vld [vmem:[#allocation5 + $0x8] sm:$0xff]
    %v63 = vld [vmem:[#allocation5 + $0x10] sm:$0xff]
    %v64 = vld [vmem:[#allocation5 + $0x18] sm:$0xff]
    %v65 = vld [vmem:[%s2] sm:$0x1]
    %v67 = vlaneseq
    %v68 = vshrl.u32 %v67, 7
    %v69 = vsub.s32 0, %v68
    %v70 = vrot.slane %v65, %v69
    %vm72 = vcmask 261120
    %v74 = vsel %vm72, %v60, 0
    %76 = vmatprep.subr.mxu0 0.0
    %77 = vmatpush1.msra.mxu0 0.0
    %78 = vmatprep.subr.mxu0 0.0
    %79 = vmatpush1.msra.mxu0 0.0
    %80 = vmatprep.subr.mxu0 0.0
    %81 = vmatpush1.msra.mxu0 0.0
    %82 = vmatprep.subr.mxu0 0.0
    %83 = vmatpush1.msra.mxu0 0.0
    %84 = vmatprep.subr.mxu0 0.0
    %85 = vmatpush1.msra.mxu0 0.0
    %86 = vmatprep.subr.mxu0 0.0
    %87 = vmatpush1.msra.mxu0 0.0
    %88 = vmatprep.subr.mxu0 0.0
    %89 = vmatpush1.msra.mxu0 0.0
    %90 = vmatprep.subr.mxu0 0.0
    %91 = vmatpush1.msra.mxu0 0.0
    %92 = vmatprep.subr.mxu0 0.0
    %93 = vmatpush1.msra.mxu0 0.0
    %94 = vmatprep.subr.mxu0 0.0
    %95 = vmatpush1.msra.mxu0 0.0
    %96 = vmatprep.subr.mxu0 0.0
    %97 = vmatpush1.msra.mxu0 0.0
    %98 = vmatprep.subr.mxu0 0.0
    %99 = vmatpush1.msra.mxu0 0.0
    %100 = vmatprep.subr.mxu0 0.0
    %101 = vmatpush1.msra.mxu0 %v64
    %102 = vmatprep.subr.mxu0 0.0
    %103 = vmatpush1.msra.mxu0 %v63
    %104 = vmatprep.subr.mxu0 0.0
    %105 = vmatpush1.msra.mxu0 %v62
    %106 = vmatprep.subr.mxu0 0.0
    %107 = vmatpush1.msra.mxu0 %v61
    %108 = vmatprep.subr.mxu0 0.0
    %109 = vmatpush2.msra.mxu0 0.0
    %110 = vmatprep.subr.mxu0 0.0
    %111 = vmatpush2.msra.mxu0 0.0
    %112 = vmatprep.subr.mxu0 0.0
    %113 = vmatpush2.msra.mxu0 0.0
    %114 = vmatprep.subr.mxu0 0.0
    %115 = vmatpush2.msra.mxu0 0.0
    %116 = vmatprep.subr.mxu0 0.0
    %117 = vmatpush2.msra.mxu0 0.0
    %118 = vmatprep.subr.mxu0 0.0
    %119 = vmatpush2.msra.mxu0 0.0
    %120 = vmatprep.subr.mxu0 0.0
    %121 = vmatpush2.msra.mxu0 0.0
    %122 = vmatprep.subr.mxu0 0.0
    %123 = vmatpush2.msra.mxu0 0.0
    %124 = vmatprep.subr.mxu0 0.0
    %125 = vmatpush2.msra.mxu0 0.0
    %126 = vmatprep.subr.mxu0 0.0
    %127 = vmatpush2.msra.mxu0 0.0
    %128 = vmatprep.subr.mxu0 0.0
    %129 = vmatpush2.msra.mxu0 0.0
    %130 = vmatprep.subr.mxu0 0.0
    %131 = vmatpush2.msra.mxu0 0.0
    %132 = vmatprep.subr.mxu0 0.0
    %133 = vmatpush2.msra.mxu0 0.0
    %134 = vmatprep.subr.mxu0 0.0
    %135 = vmatpush2.msra.mxu0 0.0
    %136 = vmatprep.subr.mxu0 0.0
    %137 = vmatpush2.msra.mxu0 0.0
    %138 = vmatprep.subr.mxu0 0.0
    %139 = vmatpush2.msra.mxu0 0.0
    %140 = vmatprep.mubr.f32.mxu0 0.0
    %141 = vmatmul.mubr.f32.gmra.mxu0 %v74
    %v142 = vpop.f32.mrf.mxu0
    %v143 = vadd.f32 %v70, %v142
    %v144 = vpop.f32.mrf.mxu0
    %145 = vdwg.mxu0
    %v146 = vmax.f32 %v143, 0.0
    %v147 = vld [vmem:[#allocation7] sm:$0xff]
    %v148 = vld [vmem:[#allocation7 + $0x8] sm:$0xff]
    %v149 = vld [vmem:[#allocation7 + $0x10] sm:$0xff]
    %v150 = vld [vmem:[#allocation7 + $0x18] sm:$0xff]
    %v151 = vld [vmem:[#allocation7 + $0x20] sm:$0xff]
    %v152 = vld [vmem:[#allocation7 + $0x28] sm:$0xff]
    %v153 = vld [vmem:[#allocation7 + $0x30] sm:$0xff]
    %v154 = vld [vmem:[#allocation7 + $0x38] sm:$0xff]
    %v155 = vld [vmem:[#allocation7 + $0x40] sm:$0xff]
    %v156 = vld [vmem:[#allocation7 + $0x48] sm:$0xff]
    %v157 = vld [vmem:[#allocation7 + $0x50] sm:$0xff]
    %v158 = vld [vmem:[#allocation7 + $0x58] sm:$0xff]
    %v159 = vld [vmem:[#allocation7 + $0x60] sm:$0xff]
    %v160 = vld [vmem:[#allocation7 + $0x68] sm:$0xff]
    %v161 = vld [vmem:[#allocation7 + $0x70] sm:$0xff]
    %v162 = vld [vmem:[#allocation7 + $0x78] sm:$0xff]
    %v163 = vld [vmem:[%s4] sm:$0x1]
    %v165 = vlaneseq
    %v166 = vshrl.u32 %v165, 7
    %v167 = vsub.s32 0, %v166
    %v168 = vrot.slane %v163, %v167
    %170 = vmatprep.subr.mxu0 0.0
    %171 = vmatpush1.msra.mxu0 %v162
    %172 = vmatprep.subr.mxu0 0.0
    %173 = vmatpush1.msra.mxu0 %v161
    %174 = vmatprep.subr.mxu0 0.0
    %175 = vmatpush1.msra.mxu0 %v160
    %176 = vmatprep.subr.mxu0 0.0
    %177 = vmatpush1.msra.mxu0 %v159
    %178 = vmatprep.subr.mxu0 0.0
    %179 = vmatpush1.msra.mxu0 %v158
    %180 = vmatprep.subr.mxu0 0.0
    %181 = vmatpush1.msra.mxu0 %v157
    %182 = vmatprep.subr.mxu0 0.0
    %183 = vmatpush1.msra.mxu0 %v156
    %184 = vmatprep.subr.mxu0 0.0
    %185 = vmatpush1.msra.mxu0 %v155
    %186 = vmatprep.subr.mxu0 0.0
    %187 = vmatpush1.msra.mxu0 %v154
    %188 = vmatprep.subr.mxu0 0.0
    %189 = vmatpush1.msra.mxu0 %v153
    %190 = vmatprep.subr.mxu0 0.0
    %191 = vmatpush1.msra.mxu0 %v152
    %192 = vmatprep.subr.mxu0 0.0
    %193 = vmatpush1.msra.mxu0 %v151
    %194 = vmatprep.subr.mxu0 0.0
    %195 = vmatpush1.msra.mxu0 %v150
    %196 = vmatprep.subr.mxu0 0.0
    %197 = vmatpush1.msra.mxu0 %v149
    %198 = vmatprep.subr.mxu0 0.0
    %199 = vmatpush1.msra.mxu0 %v148
    %200 = vmatprep.subr.mxu0 0.0
    %201 = vmatpush1.msra.mxu0 %v147
    %202 = vmatprep.subr.mxu0 0.0
    %203 = vmatpush2.msra.mxu0 0.0
    %204 = vmatprep.subr.mxu0 0.0
    %205 = vmatpush2.msra.mxu0 0.0
    %206 = vmatprep.subr.mxu0 0.0
    %207 = vmatpush2.msra.mxu0 0.0
    %208 = vmatprep.subr.mxu0 0.0
    %209 = vmatpush2.msra.mxu0 0.0
    %210 = vmatprep.subr.mxu0 0.0
    %211 = vmatpush2.msra.mxu0 0.0
    %212 = vmatprep.subr.mxu0 0.0
    %213 = vmatpush2.msra.mxu0 0.0
    %214 = vmatprep.subr.mxu0 0.0
    %215 = vmatpush2.msra.mxu0 0.0
    %216 = vmatprep.subr.mxu0 0.0
    %217 = vmatpush2.msra.mxu0 0.0
    %218 = vmatprep.subr.mxu0 0.0
    %219 = vmatpush2.msra.mxu0 0.0
    %220 = vmatprep.subr.mxu0 0.0
    %221 = vmatpush2.msra.mxu0 0.0
    %222 = vmatprep.subr.mxu0 0.0
    %223 = vmatpush2.msra.mxu0 0.0
    %224 = vmatprep.subr.mxu0 0.0
    %225 = vmatpush2.msra.mxu0 0.0
    %226 = vmatprep.subr.mxu0 0.0
    %227 = vmatpush2.msra.mxu0 0.0
    %228 = vmatprep.subr.mxu0 0.0
    %229 = vmatpush2.msra.mxu0 0.0
    %230 = vmatprep.subr.mxu0 0.0
    %231 = vmatpush2.msra.mxu0 0.0
    %232 = vmatprep.subr.mxu0 0.0
    %233 = vmatpush2.msra.mxu0 0.0
    %234 = vmatprep.mubr.f32.mxu0 0.0
    %235 = vmatmul.mubr.f32.gmra.mxu0 %v146
    %v236 = vpop.f32.mrf.mxu0
    %v237 = vadd.f32 %v168, %v236
    %v238 = vpop.f32.mrf.mxu0
    %239 = vdwg.mxu0
    %240 = vst [vmem:[#allocation8] sm:$0xff] %v237
    // Predicated region
    $region34: #{tpu_custom_call.1} parent=1 // pred_check
      _
    $region35: #{tpu_custom_call.1} parent=1 // pred_check_branch
      %242 = sbr.rel (0) target = $region37
    $region36: #{tpu_custom_call.1} parent=1 // pred_region
      %s244 = ssub.s32 128, 128
      %245 = vsyncadd [#allocation4], %s244
      %s247 = sshll.u32 [#allocation8], 4
      %s248 = int_to_ptr.vmem [resolvable:$true] %s247
      %250 = dma.vmem_to_hbm [thread:$0]  %s248, 128, %s5, [#allocation4]
    $region37: #{tpu_custom_call.1} parent=1 // pred_fallthru
      _
    // Predicated region
    $region38: #{tpu_custom_call.1} parent=1 // pred_check
      _
    $region39: #{tpu_custom_call.1} parent=1 // pred_check_branch
      %252 = sbr.rel (0) target = $region41
    $region40: #{tpu_custom_call.1} parent=1 // pred_region
      %253 = dma.done [#allocation4], 128
    $region41: #{tpu_custom_call.1} parent=1 // pred_fallthru
      _
    %254 = vsyncpa [#allocation3], 1
    %255 = vsyncpa [#allocation6], 1
    %256 = vsyncpa [#allocation4], 1

</llo_original>
